<compile_context>
chip_gen: v7x
topology: tpu7x:2x2x1
jax: 0.10.0
libtpu: 0.0.40
codegen_flags: <defaults>
</compile_context>

<pallas_src>
import jax
import jax.numpy as jnp
from jax.experimental import pallas as pl
from jax.experimental.pallas import tpu as pltpu

N_STATES = 1
HIDDEN = 10
N_ACTIONS = 5


def _round_up(n, m):
    return ((n + m - 1) // m) * m


# Lane-padded hidden width (intermediate only, lives in vregs) and the
# sublane-aligned padded action width used for the narrow output writeback.
H_PAD = 128                      # hidden 10 -> 128 lanes (MXU-friendly)
A_OUT = _round_up(N_ACTIONS, 8)  # actions 5 -> 8 output lanes


def _net_kernel(x_ref, w1_ref, b1_ref, w2_ref, b2_ref, o_ref):
    # fc1: K = 1 contraction == broadcast outer product -> pure VPU, no MXU.
    #   (TILE_B, 1) * (1, H_PAD) + (1, H_PAD) -> (TILE_B, H_PAD)
    h = x_ref[...] * w1_ref[...] + b1_ref[...]
    h = jnp.maximum(h, 0.0)  # ReLU (zero-padded hidden lanes stay exactly 0)
    # fc2: lane-dense (128 x 128) tile on the MXU (padded cols are zero).
    y = jnp.dot(h, w2_ref[...], preferred_element_type=jnp.float32)
    # Store only the A_OUT real action lanes -> narrow HBM writeback.
    a = o_ref.shape[-1]
    o_ref[...] = (y[:, :a] + b2_ref[...]).astype(o_ref.dtype)


def pad_params(w1, b1, w2, b2):
    """Zero-pad parameters to TPU-friendly shapes.

    Call ONCE (at init / after each optimizer step) and reuse the result --
    padding per forward call was the dominant cost at small batches.
    Weights are stored transposed vs PyTorch: w1 [N_STATES, HIDDEN],
    w2 [HIDDEN, N_ACTIONS]; biases are [1, HIDDEN] / [1, N_ACTIONS].
    """
    w1p = jnp.pad(w1, ((0, 0), (0, H_PAD - HIDDEN)))                  # (1, 128)
    b1p = jnp.pad(b1, ((0, 0), (0, H_PAD - HIDDEN)))                  # (1, 128)
    w2p = jnp.pad(w2, ((0, H_PAD - HIDDEN), (0, H_PAD - N_ACTIONS)))  # (128, 128)
    b2p = jnp.pad(b2, ((0, 0), (0, A_OUT - N_ACTIONS)))               # (1, 8)
    return w1p, b1p, w2p, b2p


def _choose_tile_b(B):
    b8 = _round_up(max(B, 8), 8)
    if b8 >= 4096:
        # Large batch: 2048-row tiles amortize the ~0.35us/step overhead while
        # double-buffered (2048,1) input + (2048,8) output blocks stay ~4 MiB,
        # safely under the 32 MiB scoped-VMEM default (and v7x's 64 MiB VMEM).
        return 2048
    if b8 >= 16:
        # Moderate batch: at least two grid steps so the "parallel" batch axis
        # can be sharded across both v7x TensorCores; tiles stay sublane (8)
        # aligned.
        return _round_up((b8 + 1) // 2, 8)
    return b8  # tiny batch: a single 8-row tile


def net_forward(x, padded_params, *, tile_b=None):
    """Forward pass of the DQN Net.

    x: [B, N_STATES] f32 -> [B, N_ACTIONS] f32.
    `padded_params` is the tuple returned by `pad_params` (pad once, reuse).
    """
    w1p, b1p, w2p, b2p = padded_params
    B = x.shape[0]
    if tile_b is None:
        tile_b = _choose_tile_b(B)
    b_pad = _round_up(B, tile_b)

    xp = x if b_pad == B else jnp.pad(x, ((0, b_pad - B), (0, 0)))

    # Advisory cost estimate reflecting the *actual padded* traffic/compute.
    cost = pl.CostEstimate(
        flops=2 * b_pad * H_PAD * (H_PAD + N_STATES),
        transcendentals=0,
        bytes_accessed=4 * (b_pad * N_STATES            # x read
                            + b_pad * A_OUT             # narrow output write
                            + w1p.size + b1p.size + w2p.size + b2p.size),
    )

    out_padded = pl.pallas_call(
        _net_kernel,
        out_shape=jax.ShapeDtypeStruct((b_pad, A_OUT), jnp.float32),
        grid=(b_pad // tile_b,),
        in_specs=[
            pl.BlockSpec((tile_b, N_STATES), lambda i: (i, 0)),  # x batch tile
            pl.BlockSpec((N_STATES, H_PAD), lambda i: (0, 0)),   # W1 (resident)
            pl.BlockSpec((1, H_PAD), lambda i: (0, 0)),          # b1 (resident)
            pl.BlockSpec((H_PAD, H_PAD), lambda i: (0, 0)),      # W2 (resident)
            pl.BlockSpec((1, A_OUT), lambda i: (0, 0)),          # b2 (resident)
        ],
        # Narrow, 8-lane output block: last block dim equals the full array
        # dim, so this is legal and cuts output DMA bytes 16x vs 128 lanes.
        out_specs=pl.BlockSpec((tile_b, A_OUT), lambda i: (i, 0)),
        compiler_params=pltpu.CompilerParams(
            # Batch tiles are independent -> shard across both TCs on v7x.
            dimension_semantics=("parallel",),
        ),
        cost_estimate=cost,
    )(xp, w1p, b1p, w2p, b2p)

    return out_padded[:B, :N_ACTIONS]


def init_params(key):
    """Deterministic synthetic init matching the PyTorch module's shapes.
    Weights ~ N(0, 0.1) (as in the module); biases small uniform."""
    k1, k2, k3, k4 = jax.random.split(key, 4)
    w1 = 0.1 * jax.random.normal(k1, (N_STATES, HIDDEN), dtype=jnp.float32)
    b1 = 0.01 * jax.random.uniform(k2, (1, HIDDEN), dtype=jnp.float32,
                                   minval=-1.0, maxval=1.0)
    w2 = 0.1 * jax.random.normal(k3, (HIDDEN, N_ACTIONS), dtype=jnp.float32)
    b2 = 0.01 * jax.random.uniform(k4, (1, N_ACTIONS), dtype=jnp.float32,
                                   minval=-1.0, maxval=1.0)
    return w1, b1, w2, b2


def reference_forward(x, w1, b1, w2, b2):
    h = jnp.maximum(x @ w1 + b1, 0.0)
    return h @ w2 + b2


if __name__ == "__main__":
    key = jax.random.PRNGKey(0)
    kp, kx = jax.random.split(key)

    # B=13 exercises batch padding, the 2-step "parallel" grid, and the
    # narrow-output slice path, while staying small.
    B = 13
    x = jax.random.normal(kx, (B, N_STATES), dtype=jnp.float32)

    w1, b1, w2, b2 = init_params(kp)
    padded_params = pad_params(w1, b1, w2, b2)   # padded ONCE, outside the call path

    out = net_forward(x, padded_params)
    out = jax.block_until_ready(out)

    ref = reference_forward(x, w1, b1, w2, b2)
    assert out.shape == (B, N_ACTIONS)
    assert jnp.allclose(out, ref, atol=1e-5, rtol=1e-5)

    print("KERNEL_OK")
</pallas_src>

<mosaic_0001>
module attributes {stable_mosaic.version = 11 : i64} {
  func.func @_net_kernel(%arg0: i32, %arg1: memref<8x1xf32, #tpu.memory_space<vmem>>, %arg2: memref<1x128xf32, #tpu.memory_space<vmem>>, %arg3: memref<1x128xf32, #tpu.memory_space<vmem>>, %arg4: memref<128x128xf32, #tpu.memory_space<vmem>>, %arg5: memref<1x8xf32, #tpu.memory_space<vmem>>, %arg6: memref<8x8xf32, #tpu.memory_space<vmem>>) attributes {dimension_semantics = [#tpu.dimension_semantics<parallel>], iteration_bounds = array<i64: 2>, scalar_prefetch = 0 : i64, scratch_operands = 0 : i64, tpu.core_type = #tpu.core_type<tc>, window_params = [{transform_indices = @transform_0, window_bounds = array<i64: 8, 1>}, {pipeline_mode = #tpu.pipeline_mode<synchronous>, transform_indices = @transform_1, window_bounds = array<i64: 1, 128>}, {pipeline_mode = #tpu.pipeline_mode<synchronous>, transform_indices = @transform_2, window_bounds = array<i64: 1, 128>}, {pipeline_mode = #tpu.pipeline_mode<synchronous>, transform_indices = @transform_3, window_bounds = array<i64: 128, 128>}, {pipeline_mode = #tpu.pipeline_mode<synchronous>, transform_indices = @transform_4, window_bounds = array<i64: 1, 8>}, {transform_indices = @transform_5, window_bounds = array<i64: 8, 8>}]} {
    %c0 = arith.constant 0 : index
    %c0_0 = arith.constant 0 : index
    %0 = vector.load %arg1[%c0, %c0_0] : memref<8x1xf32, #tpu.memory_space<vmem>>, vector<8x1xf32>
    %c0_1 = arith.constant 0 : index
    %c0_2 = arith.constant 0 : index
    %1 = vector.load %arg2[%c0_1, %c0_2] : memref<1x128xf32, #tpu.memory_space<vmem>>, vector<1x128xf32>
    %2 = vector.broadcast %0 : vector<8x1xf32> to vector<8x128xf32>
    %3 = vector.broadcast %1 : vector<1x128xf32> to vector<8x128xf32>
    %4 = arith.mulf %2, %3 : vector<8x128xf32>
    %c0_3 = arith.constant 0 : index
    %c0_4 = arith.constant 0 : index
    %5 = vector.load %arg3[%c0_3, %c0_4] : memref<1x128xf32, #tpu.memory_space<vmem>>, vector<1x128xf32>
    %6 = vector.broadcast %5 : vector<1x128xf32> to vector<8x128xf32>
    %7 = arith.addf %4, %6 : vector<8x128xf32>
    %cst = arith.constant 0.000000e+00 : f32
    %8 = vector.broadcast %cst : f32 to vector<8x128xf32>
    %9 = arith.maximumf %7, %8 : vector<8x128xf32>
    %c0_5 = arith.constant 0 : index
    %c0_6 = arith.constant 0 : index
    %10 = vector.load %arg4[%c0_5, %c0_6] : memref<128x128xf32, #tpu.memory_space<vmem>>, vector<128x128xf32>
    %cst_7 = arith.constant dense<0.000000e+00> : vector<8x128xf32>
    %11 = tpu.matmul %9, %10, %cst_7 {dimension_numbers = #tpu.dot_dimension_numbers<[1], [0], [0], [1], [0, 0, 1, 1], [], []>} : vector<8x128xf32>, vector<128x128xf32>, vector<8x128xf32> -> vector<8x128xf32>
    %12 = vector.extract_strided_slice %11 {offsets = [0, 0], sizes = [8, 8], strides = [1, 1]} : vector<8x128xf32> to vector<8x8xf32>
    %c0_8 = arith.constant 0 : index
    %c0_9 = arith.constant 0 : index
    %13 = vector.load %arg5[%c0_8, %c0_9] : memref<1x8xf32, #tpu.memory_space<vmem>>, vector<1x8xf32>
    %14 = vector.broadcast %13 : vector<1x8xf32> to vector<8x8xf32>
    %15 = arith.addf %12, %14 : vector<8x8xf32>
    %c0_10 = arith.constant 0 : index
    %c0_11 = arith.constant 0 : index
    %16 = vector.load %arg6[%c0_10, %c0_11] : memref<8x8xf32, #tpu.memory_space<vmem>>, vector<8x8xf32>
    tpu.vector_store %arg6[%c0_10, %c0_11], %15 {strides = array<i32>} : memref<8x8xf32, #tpu.memory_space<vmem>>, vector<8x8xf32>,
    return
  }
  func.func @transform_0(%arg0: i32) -> (i32, i32) {
    %c0_i32 = arith.constant 0 : i32
    %c0_i32_0 = arith.constant 0 : i32
    return %arg0, %c0_i32 : i32, i32
  }
  func.func @transform_1(%arg0: i32) -> (i32, i32) {
    %c0_i32 = arith.constant 0 : i32
    %c0_i32_0 = arith.constant 0 : i32
    %c0_i32_1 = arith.constant 0 : i32
    return %c0_i32, %c0_i32_0 : i32, i32
  }
  func.func @transform_2(%arg0: i32) -> (i32, i32) {
    %c0_i32 = arith.constant 0 : i32
    %c0_i32_0 = arith.constant 0 : i32
    %c0_i32_1 = arith.constant 0 : i32
    return %c0_i32, %c0_i32_0 : i32, i32
  }
  func.func @transform_3(%arg0: i32) -> (i32, i32) {
    %c0_i32 = arith.constant 0 : i32
    %c0_i32_0 = arith.constant 0 : i32
    %c0_i32_1 = arith.constant 0 : i32
    return %c0_i32, %c0_i32_0 : i32, i32
  }
  func.func @transform_4(%arg0: i32) -> (i32, i32) {
    %c0_i32 = arith.constant 0 : i32
    %c0_i32_0 = arith.constant 0 : i32
    %c0_i32_1 = arith.constant 0 : i32
    return %c0_i32, %c0_i32_0 : i32, i32
  }
  func.func @transform_5(%arg0: i32) -> (i32, i32) {
    %c0_i32 = arith.constant 0 : i32
    %c0_i32_0 = arith.constant 0 : i32
    return %arg0, %c0_i32 : i32, i32
  }
}

</mosaic_0001>

<llo_original>
// kernel: tpu_custom_call.1
$region0: #{tpu_custom_call.1}
  #allocation0 [shape = 'u32[]', space=smem, size = 0x4, offset = 0x4, fixed_abs, tag = 'smem constant byte address 0x4 - core index']
  #allocation1 [shape = 'u32[144,128]{1,0:T(1,128)}', space=vmem, size = 0x12000, scoped, tag = 'internal scratch']
  %s0 = inlined_call_operand.vmem [shape: f32[16,1], index: 0, kind: input, shape index: {}]
  %s1 = inlined_call_operand.vmem [shape: f32[1,128], index: 1, kind: input, shape index: {}]
  %s2 = inlined_call_operand.vmem [shape: f32[1,128], index: 2, kind: input, shape index: {}]
  %s3 = inlined_call_operand.hbm [shape: f32[128,128], index: 3, kind: input, shape index: {}]
  %s4 = inlined_call_operand.vmem [shape: f32[1,8], index: 4, kind: input, shape index: {}]
  %s5 = inlined_call_operand.vmem [shape: f32[16,8], index: 5, kind: output, shape index: {}]
  %s6 = sld [smem:[#allocation0]]
  $region57: #{tpu_custom_call.1} parent=0
    _
  %s8 = ssub.s32 1, %s6
  %s9 = scalar_select 0, %s8, %s6
  $region1: #{tpu_custom_call.1} parent=0
    #allocation2 [shape = 'u8[65536]{0}', space=vmem, size = 0x10000, scoped, tag = 'input window, operand 3, single buffered']
    #allocation3 [shape = 's32[2]{0}', space=sflag, size = 0x8, scoped, tag = 'scoped memory for tpu_custom_call.1']
    %10 = vsyncpa [#allocation3], 0
    loop: start=0, step=1, limit=4
    $region2: #{tpu_custom_call.1} parent=1 // loop_pre_header
      _
    $region3: #{tpu_custom_call.1} parent=1 // loop_header
      %s12 = sphi 0, %s16
      %p13 = scmp.ge.s32.totalorder %s12, 4
      %s22 = sphi 0, %s24
      %s25 = sphi 0, %s22
      %s26 = sphi 0, %s25
      %s42 = sphi 0, %s26
      %s46 = sphi 0, %s46
      %s48 = sphi 0, %s46
      %s49 = sphi 0, %s48
      %s63 = sphi 0, %s49
      %s67 = sphi 0, %s67
      %s69 = sphi 0, %s67
      %s70 = sphi 0, %s69
      %s84 = sphi 0, %s70
      %s88 = sphi 0, %s88
      %s90 = sphi 0, %s88
      %s91 = sphi 0, %s90
      %s105 = sphi 0, %s91
      %s109 = sphi 0, %s109
      %s111 = sphi 0, %s109
      %s112 = sphi 0, %s111
      %s126 = sphi 0, %s112
      %s132 = sphi 0, %s134
      %s135 = sphi 0, %s132
      %s136 = sphi 0, %s135
      %s152 = sphi 0, %s136
    $region4: #{tpu_custom_call.1} parent=1 // loop_header_branch
      %15 = sbr.rel (%p13) target = $region8
    $region5: #{tpu_custom_call.1} parent=1 // loop_body
      %s17 = ssub.s32 %s12, 1
      %s18 = ssub.s32 %s12, 2
      %s19 = sadd.s32 %s12, 1
      %s20 = ssub.s32 %s12, %s19
      %p21 = scmp.eq.s32.totalorder %s20, 0
      %s23 = sadd.s32 %s22, 1
      %s24 = scalar_select %p21, %s22, %s23
      %p27 = pneg %p21
      %p28 = scmp.eq.s32.totalorder %s12, 1
      %p29 = por %p27, %p28
      %p30 = scmp.ne.s32.totalorder %s22, %s25
      %p31 = scmp.eq.s32.totalorder %s12, 0
      %p32 = por %p30, %p31
      %p33 = scmp.ne.s32.totalorder %s22, %s25
      %p34 = scmp.eq.s32.totalorder %s17, 1
      %p35 = por %p33, %p34
      %p36 = scmp.ne.s32.totalorder %s25, %s26
      %p37 = scmp.eq.s32.totalorder %s17, 0
      %p38 = por %p36, %p37
      %p39 = scmp.ne.s32.totalorder %s25, %s26
      %p40 = scmp.eq.s32.totalorder %s18, 1
      %p41 = por %p39, %p40
      %p43 = scmp.ne.s32.totalorder %s26, %s42
      %p44 = scmp.eq.s32.totalorder %s18, 0
      %p45 = por %p43, %p44
      %s47 = sadd.s32 %s46, 1
      %p50 = scmp.eq.s32.totalorder %s12, 1
      %p51 = scmp.ne.s32.totalorder %s46, %s48
      %p52 = scmp.eq.s32.totalorder %s12, 0
      %p53 = por %p51, %p52
      %p54 = scmp.ne.s32.totalorder %s46, %s48
      %p55 = scmp.eq.s32.totalorder %s17, 1
      %p56 = por %p54, %p55
      %p57 = scmp.ne.s32.totalorder %s48, %s49
      %p58 = scmp.eq.s32.totalorder %s17, 0
      %p59 = por %p57, %p58
      %p60 = scmp.ne.s32.totalorder %s48, %s49
      %p61 = scmp.eq.s32.totalorder %s18, 1
      %p62 = por %p60, %p61
      %p64 = scmp.ne.s32.totalorder %s49, %s63
      %p65 = scmp.eq.s32.totalorder %s18, 0
      %p66 = por %p64, %p65
      %s68 = sadd.s32 %s67, 1
      %p71 = scmp.eq.s32.totalorder %s12, 1
      %p72 = scmp.ne.s32.totalorder %s67, %s69
      %p73 = scmp.eq.s32.totalorder %s12, 0
      %p74 = por %p72, %p73
      %p75 = scmp.ne.s32.totalorder %s67, %s69
      %p76 = scmp.eq.s32.totalorder %s17, 1
      %p77 = por %p75, %p76
      %p78 = scmp.ne.s32.totalorder %s69, %s70
      %p79 = scmp.eq.s32.totalorder %s17, 0
      %p80 = por %p78, %p79
      %p81 = scmp.ne.s32.totalorder %s69, %s70
      %p82 = scmp.eq.s32.totalorder %s18, 1
      %p83 = por %p81, %p82
      %p85 = scmp.ne.s32.totalorder %s70, %s84
      %p86 = scmp.eq.s32.totalorder %s18, 0
      %p87 = por %p85, %p86
      %s89 = sadd.s32 %s88, 1
      %p92 = scmp.eq.s32.totalorder %s12, 1
      %p93 = scmp.ne.s32.totalorder %s88, %s90
      %p94 = scmp.eq.s32.totalorder %s12, 0
      %p95 = por %p93, %p94
      %p96 = scmp.ne.s32.totalorder %s88, %s90
      %p97 = scmp.eq.s32.totalorder %s17, 1
      %p98 = por %p96, %p97
      %p99 = scmp.ne.s32.totalorder %s90, %s91
      %p100 = scmp.eq.s32.totalorder %s17, 0
      %p101 = por %p99, %p100
      %p102 = scmp.ne.s32.totalorder %s90, %s91
      %p103 = scmp.eq.s32.totalorder %s18, 1
      %p104 = por %p102, %p103
      %p106 = scmp.ne.s32.totalorder %s91, %s105
      %p107 = scmp.eq.s32.totalorder %s18, 0
      %p108 = por %p106, %p107
      %s110 = sadd.s32 %s109, 1
      %p113 = scmp.eq.s32.totalorder %s12, 1
      %p114 = scmp.ne.s32.totalorder %s109, %s111
      %p115 = scmp.eq.s32.totalorder %s12, 0
      %p116 = por %p114, %p115
      %p117 = scmp.ne.s32.totalorder %s109, %s111
      %p118 = scmp.eq.s32.totalorder %s17, 1
      %p119 = por %p117, %p118
      %p120 = scmp.ne.s32.totalorder %s111, %s112
      %p121 = scmp.eq.s32.totalorder %s17, 0
      %p122 = por %p120, %p121
      %p123 = scmp.ne.s32.totalorder %s111, %s112
      %p124 = scmp.eq.s32.totalorder %s18, 1
      %p125 = por %p123, %p124
      %p127 = scmp.ne.s32.totalorder %s112, %s126
      %p128 = scmp.eq.s32.totalorder %s18, 0
      %p129 = por %p127, %p128
      %s130 = ssub.s32 %s12, %s19
      %p131 = scmp.eq.s32.totalorder %s130, 0
      %s133 = sadd.s32 %s132, 1
      %s134 = scalar_select %p131, %s132, %s133
      %p137 = pneg %p131
      %p138 = scmp.eq.s32.totalorder %s12, 1
      %p139 = por %p137, %p138
      %p140 = scmp.ne.s32.totalorder %s132, %s135
      %p141 = scmp.eq.s32.totalorder %s12, 0
      %p142 = por %p140, %p141
      %p143 = scmp.ne.s32.totalorder %s132, %s135
      %p144 = scmp.eq.s32.totalorder %s17, 1
      %p145 = por %p143, %p144
      %p146 = scmp.ne.s32.totalorder %s135, %s136
      %p147 = scmp.eq.s32.totalorder %s17, 0
      %p148 = por %p146, %p147
      %p149 = scmp.ne.s32.totalorder %s135, %s136
      %p150 = scmp.eq.s32.totalorder %s18, 1
      %p151 = por %p149, %p150
      %p153 = scmp.ne.s32.totalorder %s136, %s152
      %p154 = scmp.eq.s32.totalorder %s18, 0
      %p155 = por %p153, %p154
      %p156 = scmp.le.s32.totalorder 1, %s12
      %p157 = scmp.lt.s32.totalorder %s12, 3
      %p158 = pnand %p156, %p157
      %p159 = pneg %p158
      // Predicated region
      $region9: #{tpu_custom_call.1} parent=5 // pred_check
        _
      $region10: #{tpu_custom_call.1} parent=5 // pred_check_branch
        %161 = sbr.rel (%p158) target = $region12
      $region11: #{tpu_custom_call.1} parent=5 // pred_region
        %s162 = ssub.s32 %s12, 1
        // Predicated region
        $region13: #{tpu_custom_call.1} parent=11 // pred_check
          %p163 = pneg %p59
        $region14: #{tpu_custom_call.1} parent=11 // pred_check_branch
          %165 = sbr.rel (%p163) target = $region16
        $region15: #{tpu_custom_call.1} parent=11 // pred_region
          _
        $region16: #{tpu_custom_call.1} parent=11 // pred_fallthru
          _
        // Predicated region
        $region17: #{tpu_custom_call.1} parent=11 // pred_check
          %p166 = pneg %p80
        $region18: #{tpu_custom_call.1} parent=11 // pred_check_branch
          %168 = sbr.rel (%p166) target = $region20
        $region19: #{tpu_custom_call.1} parent=11 // pred_region
          _
        $region20: #{tpu_custom_call.1} parent=11 // pred_fallthru
          _
        // Predicated region
        $region21: #{tpu_custom_call.1} parent=11 // pred_check
          %p169 = pneg %p101
        $region22: #{tpu_custom_call.1} parent=11 // pred_check_branch
          %171 = sbr.rel (%p169) target = $region24
        $region23: #{tpu_custom_call.1} parent=11 // pred_region
          %s173 = ssub.s32 2048, 2048
          %174 = vsyncadd [#allocation3], %s173
          %s175 = sshll.u32 [#allocation2], 4
          %s176 = int_to_ptr.vmem [resolvable:$true] %s175
          %181 = dma.hbm_to_vmem [thread:$0]  %s3, 2048, %s176, [#allocation3], 128, 128, 8
        $region24: #{tpu_custom_call.1} parent=11 // pred_fallthru
          _
        // Predicated region
        $region25: #{tpu_custom_call.1} parent=11 // pred_check
          %p182 = pneg %p122
        $region26: #{tpu_custom_call.1} parent=11 // pred_check_branch
          %184 = sbr.rel (%p182) target = $region28
        $region27: #{tpu_custom_call.1} parent=11 // pred_region
          _
        $region28: #{tpu_custom_call.1} parent=11 // pred_fallthru
          _
      $region12: #{tpu_custom_call.1} parent=5 // pred_fallthru
        _
      %p185 = scmp.lt.s32.totalorder %s12, 2
      // Predicated region
      $region29: #{tpu_custom_call.1} parent=5 // pred_check
        %p186 = pneg %p185
      $region30: #{tpu_custom_call.1} parent=5 // pred_check_branch
        %188 = sbr.rel (%p186) target = $region32
      $region31: #{tpu_custom_call.1} parent=5 // pred_region
        // Predicated region
        $region33: #{tpu_custom_call.1} parent=31 // pred_check
          %p189 = pneg %p32
        $region34: #{tpu_custom_call.1} parent=31 // pred_check_branch
          %191 = sbr.rel (%p189) target = $region36
        $region35: #{tpu_custom_call.1} parent=31 // pred_region
          %p192 = scmp.lt.s32.totalorder %s12, 1
          %s193 = scalar_select %p192, %s12, 1
          %s194 = smul.addr %s193, 8
          %s195 = scalar_lea.vmem %s0, %s194
        $region36: #{tpu_custom_call.1} parent=31 // pred_fallthru
          _
      $region32: #{tpu_custom_call.1} parent=5 // pred_fallthru
        _
      %p196 = scmp.le.s32.totalorder 1, %s12
      %p197 = scmp.lt.s32.totalorder %s12, 3
      %p198 = pnand %p196, %p197
      %p199 = pneg %p198
      // Predicated region
      $region37: #{tpu_custom_call.1} parent=5 // pred_check
        _
      $region38: #{tpu_custom_call.1} parent=5 // pred_check_branch
        %201 = sbr.rel (%p198) target = $region40
      $region39: #{tpu_custom_call.1} parent=5 // pred_region
        %s202 = ssub.s32 %s12, 1
        // Predicated region
        $region41: #{tpu_custom_call.1} parent=39 // pred_check
          %p203 = pneg %p101
        $region42: #{tpu_custom_call.1} parent=39 // pred_check_branch
          %205 = sbr.rel (%p203) target = $region44
        $region43: #{tpu_custom_call.1} parent=39 // pred_region
          %206 = dma.done [#allocation3], 2048
        $region44: #{tpu_custom_call.1} parent=39 // pred_fallthru
          _
        %p207 = scmp.lt.s32.totalorder %s17, 1
        %s208 = scalar_select %p207, %s17, 1
        %s209 = smul.addr %s208, 8
        %s210 = scalar_lea.vmem %s0, %s209
        %p211 = pneg %p38
        %p212 = pneg %p35
        %p213 = pneg %p59
        %p214 = pneg %p56
        %p215 = pneg %p80
        %p216 = pneg %p77
        %p217 = pneg %p101
        %p218 = pneg %p98
        %p219 = pneg %p122
        %p220 = pneg %p119
        %p221 = pneg %p148
        %p222 = pneg %p145
        %p223 = scmp.lt.s32.totalorder %s17, 1
        %s224 = scalar_select %p223, %s17, 1
        %s225 = smul.addr %s224, 8
        %s226 = scalar_lea.vmem %s5, %s225
        %p227 = scmp.lt.s32.totalorder %s17, 1
        %s228 = scalar_select %p227, %s17, 1
        %s229 = smul.addr %s228, 8
        %s230 = scalar_lea.vmem %s0, %s229
        %p231 = scmp.lt.s32.totalorder %s17, 1
        %s232 = scalar_select %p231, %s17, 1
        %s233 = smul.addr %s232, 8
        %s234 = scalar_lea.vmem %s5, %s233
        %v235 = vld [vmem:[%s230] sm:$0xff]
        %v236 = vld [vmem:[%s1] sm:$0x1]
        %238 = vset.pattern.permute.xlu0 0
        %239 = vperm.xlu0 %238, %v235
        %v240 = vpop.permute.xlu0 %239
        %v243 = vlaneseq
        %v244 = vshrl.u32 %v243, 7
        %v245 = vsub.s32 0, %v244
        %v246 = vrot.slane %v236, %v245
        %v248 = vmul.f32 %v240, %v246
        %v249 = vld [vmem:[%s2] sm:$0x1]
        %v251 = vlaneseq
        %v252 = vshrl.u32 %v251, 7
        %v253 = vsub.s32 0, %v252
        %v254 = vrot.slane %v249, %v253
        %v256 = vadd.f32 %v248, %v254
        %v257 = vmax.f32 %v256, 0.0
        %v258 = vld [vmem:[#allocation2] sm:$0xff]
        %v259 = vld [vmem:[#allocation2 + $0x8] sm:$0xff]
        %v260 = vld [vmem:[#allocation2 + $0x10] sm:$0xff]
        %v261 = vld [vmem:[#allocation2 + $0x18] sm:$0xff]
        %v262 = vld [vmem:[#allocation2 + $0x20] sm:$0xff]
        %v263 = vld [vmem:[#allocation2 + $0x28] sm:$0xff]
        %v264 = vld [vmem:[#allocation2 + $0x30] sm:$0xff]
        %v265 = vld [vmem:[#allocation2 + $0x38] sm:$0xff]
        %v266 = vld [vmem:[#allocation2 + $0x40] sm:$0xff]
        %v267 = vld [vmem:[#allocation2 + $0x48] sm:$0xff]
        %v268 = vld [vmem:[#allocation2 + $0x50] sm:$0xff]
        %v269 = vld [vmem:[#allocation2 + $0x58] sm:$0xff]
        %v270 = vld [vmem:[#allocation2 + $0x60] sm:$0xff]
        %v271 = vld [vmem:[#allocation2 + $0x68] sm:$0xff]
        %v272 = vld [vmem:[#allocation2 + $0x70] sm:$0xff]
        %v273 = vld [vmem:[#allocation2 + $0x78] sm:$0xff]
        %274 = vmatprep.subr.mxu0 0.0
        %275 = vmatpush1.msra.mxu0 %v258
        %276 = vmatprep.subr.mxu0 0.0
        %277 = vmatpush1.msra.mxu0 %v259
        %278 = vmatprep.subr.mxu0 0.0
        %279 = vmatpush1.msra.mxu0 %v260
        %280 = vmatprep.subr.mxu0 0.0
        %281 = vmatpush1.msra.mxu0 %v261
        %282 = vmatprep.subr.mxu0 0.0
        %283 = vmatpush1.msra.mxu0 %v262
        %284 = vmatprep.subr.mxu0 0.0
        %285 = vmatpush1.msra.mxu0 %v263
        %286 = vmatprep.subr.mxu0 0.0
        %287 = vmatpush1.msra.mxu0 %v264
        %288 = vmatprep.subr.mxu0 0.0
        %289 = vmatpush1.msra.mxu0 %v265
        %290 = vmatprep.subr.mxu0 0.0
        %291 = vmatpush1.msra.mxu0 %v266
        %292 = vmatprep.subr.mxu0 0.0
        %293 = vmatpush1.msra.mxu0 %v267
        %294 = vmatprep.subr.mxu0 0.0
        %295 = vmatpush1.msra.mxu0 %v268
        %296 = vmatprep.subr.mxu0 0.0
        %297 = vmatpush1.msra.mxu0 %v269
        %298 = vmatprep.subr.mxu0 0.0
        %299 = vmatpush1.msra.mxu0 %v270
        %300 = vmatprep.subr.mxu0 0.0
        %301 = vmatpush1.msra.mxu0 %v271
        %302 = vmatprep.subr.mxu0 0.0
        %303 = vmatpush1.msra.mxu0 %v272
        %304 = vmatprep.subr.mxu0 0.0
        %305 = vmatpush1.msra.mxu0 %v273
        %306 = vmatprep.subr.mxu0 0.0
        %307 = vmatpush1.msra.mxu0 0.0
        %308 = vmatprep.subr.mxu0 0.0
        %309 = vmatpush1.msra.mxu0 0.0
        %310 = vmatprep.subr.mxu0 0.0
        %311 = vmatpush1.msra.mxu0 0.0
        %312 = vmatprep.subr.mxu0 0.0
        %313 = vmatpush1.msra.mxu0 0.0
        %314 = vmatprep.subr.mxu0 0.0
        %315 = vmatpush1.msra.mxu0 0.0
        %316 = vmatprep.subr.mxu0 0.0
        %317 = vmatpush1.msra.mxu0 0.0
        %318 = vmatprep.subr.mxu0 0.0
        %319 = vmatpush1.msra.mxu0 0.0
        %320 = vmatprep.subr.mxu0 0.0
        %321 = vmatpush1.msra.mxu0 0.0
        %322 = vmatprep.subr.mxu0 0.0
        %323 = vmatpush1.msra.mxu0 0.0
        %324 = vmatprep.subr.mxu0 0.0
        %325 = vmatpush1.msra.mxu0 0.0
        %326 = vmatprep.subr.mxu0 0.0
        %327 = vmatpush1.msra.mxu0 0.0
        %328 = vmatprep.subr.mxu0 0.0
        %329 = vmatpush1.msra.mxu0 0.0
        %330 = vmatprep.subr.mxu0 0.0
        %331 = vmatpush1.msra.mxu0 0.0
        %332 = vmatprep.subr.mxu0 0.0
        %333 = vmatpush1.msra.mxu0 0.0
        %334 = vmatprep.subr.mxu0 0.0
        %335 = vmatpush1.msra.mxu0 0.0
        %336 = vmatprep.subr.mxu0 0.0
        %337 = vmatpush1.msra.mxu0 0.0
        %338 = vmatprep.mubr.f32.mxu0 0.0
        %339 = vmatmul.mubr.f32.gmra.mrb[0].mxu0 %v257
        %v340 = vpop.f32.mrb[0].mxu0
        %v341 = vadd.f32 0.0, %v340
        %v342 = vpop.f32.mrb[0].mxu0
        %343 = vdwg.mxu0
        %v344 = vld [vmem:[%s4] sm:$0x1]
        %v346 = vlaneseq
        %v347 = vshrl.u32 %v346, 7
        %v348 = vsub.s32 0, %v347
        %v349 = vrot.slane %v344, %v348
        %v351 = vadd.f32 %v341, %v349
        %vm352 = vcmask 64512
        %353 = vst.msk [vmem:[%s234] sm:$0xff] %vm352, %v351
        %p354 = scmp.lt.s32.totalorder %s17, 1
        %s355 = scalar_select %p354, %s17, 1
        %s356 = smul.addr %s355, 8
        %s357 = scalar_lea.vmem %s5, %s356
        // Predicated region
        $region45: #{tpu_custom_call.1} parent=39 // pred_check
          %p358 = pneg %p145
        $region46: #{tpu_custom_call.1} parent=39 // pred_check_branch
          %360 = sbr.rel (%p358) target = $region48
        $region47: #{tpu_custom_call.1} parent=39 // pred_region
          _
        $region48: #{tpu_custom_call.1} parent=39 // pred_fallthru
          _
      $region40: #{tpu_custom_call.1} parent=5 // pred_fallthru
        _
      %p361 = scmp.le.s32.totalorder 2, %s12
      // Predicated region
      $region49: #{tpu_custom_call.1} parent=5 // pred_check
        %p362 = pneg %p361
      $region50: #{tpu_custom_call.1} parent=5 // pred_check_branch
        %364 = sbr.rel (%p362) target = $region52
      $region51: #{tpu_custom_call.1} parent=5 // pred_region
        %s365 = ssub.s32 %s12, 2
        // Predicated region
        $region53: #{tpu_custom_call.1} parent=51 // pred_check
          %p366 = pneg %p151
        $region54: #{tpu_custom_call.1} parent=51 // pred_check_branch
          %368 = sbr.rel (%p366) target = $region56
        $region55: #{tpu_custom_call.1} parent=51 // pred_region
          %p369 = scmp.lt.s32.totalorder %s18, 1
          %s370 = scalar_select %p369, %s18, 1
          %s371 = smul.addr %s370, 8
          %s372 = scalar_lea.vmem %s5, %s371
        $region56: #{tpu_custom_call.1} parent=51 // pred_fallthru
          _
      $region52: #{tpu_custom_call.1} parent=5 // pred_fallthru
        _
    $region6: #{tpu_custom_call.1} parent=1 // loop_footer
      %s16 = sadd.s32 1, %s12
    $region7: #{tpu_custom_call.1} parent=1 // loop_footer_branch
      %11 = sbr.rel target = $region3
    $region8: #{tpu_custom_call.1} parent=1 // loop_exit
      _
    %373 = vsyncpa [#allocation3], 1
    %s374 = scalar_lea.sflag [#allocation3], 1
    %375 = vsyncpa %s374, 1

</llo_original>
